<compile_context>
chip_gen: v5e
topology: v5e:2x2
jax: 0.10.0
libtpu: 0.0.40
codegen_flags: <defaults>
</compile_context>

<pallas_src>
import typing as tp

import jax
import jax.numpy as jnp
from jax.experimental import pallas as pl
from jax.experimental.pallas import tpu as pltpu


def _round_up(x: int, m: int) -> int:
    return ((x + m - 1) // m) * m


def _vmem_capacity_bytes() -> int:
    try:
        return int(pltpu.get_tpu_info().vmem_capacity_bytes)
    except Exception:
        return 64 << 20  # conservative (v7x per-TC VMEM)


# ----------------------------------------------------------------------------
# torch.nan_to_num semantics (nan -> 0, +inf -> finfo.max, -inf -> finfo.min)
# ----------------------------------------------------------------------------
def _sanitize(x: jax.Array) -> jax.Array:
    """Pure elementwise nan_to_num; reusable inside any consumer Pallas kernel
    so a concrete actual_forward can fuse it with its first layer."""
    finfo = jnp.finfo(x.dtype)
    y = jnp.where(jnp.isnan(x), jnp.zeros_like(x), x)
    # clip maps -inf -> finfo.min and +inf -> finfo.max in 2 min/max ops.
    return jnp.clip(y, finfo.min, finfo.max)


def _nan_to_num_kernel(x_ref, o_ref):
    o_ref[...] = _sanitize(x_ref[...])


_LANES = 1024                     # lane-dense slab width (multiple of 128)
_SMALL_INPUT_BYTES = 1 << 20      # below this, let XLA fuse jnp.nan_to_num
_SUBLANE_MULT = {4: 8, 2: 16, 1: 32}   # dtype-aware sublane packing multiple


def nan_to_num_pallas(x: jax.Array, *, force_pallas: bool = False) -> jax.Array:
    if not jnp.issubdtype(x.dtype, jnp.floating):
        return x  # torch.nan_to_num is identity on integer dtypes
    if x.size == 0:
        return x
    itemsize = jnp.dtype(x.dtype).itemsize
    if (not force_pallas) and x.size * itemsize < _SMALL_INPUT_BYTES:
        # Tiny RL states: launch/grid overhead would dominate a Pallas call.
        # TODO(synk): a concrete actual_forward should fuse _sanitize() into its
        # first layer's kernel and skip any standalone nan_to_num pass entirely.
        return jnp.nan_to_num(x)

    sub = _SUBLANE_MULT.get(itemsize, 8)

    # Flatten -> zero-pad -> view as a lane-dense (rows_pad, 1024) slab.
    flat = x.reshape(-1)
    n = flat.shape[0]
    rows = pl.cdiv(n, _LANES)
    rows_pad = _round_up(rows, sub)
    total = rows_pad * _LANES
    if total != n:
        flat = jnp.pad(flat, (0, total - n))
    x2 = flat.reshape(rows_pad, _LANES)

    # Tile cap: ~8 MiB tiles on 128 MiB-VMEM parts (v5e/v6e), ~2 MiB on v7x.
    vmem_cap = _vmem_capacity_bytes()
    tile_budget = (8 << 20) if vmem_cap >= (100 << 20) else (2 << 20)
    bm = (tile_budget // (_LANES * itemsize)) // sub * sub
    bm = max(sub, min(rows_pad, bm))
    grid = (pl.cdiv(rows_pad, bm),)

    # Double-buffered in + out tiles, plus headroom for compiler scratch.
    footprint = 2 * 2 * bm * _LANES * itemsize
    vmem_limit = int(max(32 << 20, footprint + (4 << 20)))

    out = pl.pallas_call(
        _nan_to_num_kernel,
        out_shape=jax.ShapeDtypeStruct((rows_pad, _LANES), x.dtype),
        grid=grid,
        in_specs=[pl.BlockSpec((bm, _LANES), lambda i: (i, 0))],
        out_specs=pl.BlockSpec((bm, _LANES), lambda i: (i, 0)),
        compiler_params=pltpu.CompilerParams(
            # TODO(synk): on v7x, verify 2-TensorCore sharding; if plain
            # "parallel" does not shard, switch this axis to pltpu.CORE_PARALLEL.
            dimension_semantics=("parallel",),
            vmem_limit_bytes=vmem_limit,
        ),
    )(x2)
    return out.reshape(-1)[:n].reshape(x.shape)


# ----------------------------------------------------------------------------
# align_prediction — gather the prediction row through a cached inverse index:
#   out[n] = prediction[inv[n]] if inv[n] >= 0 else 0
# Single lane-dense tile (n_pad = round_up(N, 128)); no one-hot, no MXU.
# ----------------------------------------------------------------------------
def _align_gather_kernel(inv_ref, pred_ref, o_ref):
    # inv_ref : (1, W) int32  — inv[n] = cross-section slot feeding ticker n, or -1
    # pred_ref: (1, W)        — prediction, zero-padded to W lanes
    # o_ref   : (1, W)
    inv = inv_ref[...]
    valid = inv >= 0
    safe = jnp.where(valid, inv, 0)
    gathered = jnp.take_along_axis(pred_ref[...], safe, axis=-1,
                                   mode="promise_in_bounds")
    o_ref[...] = jnp.where(valid, gathered, jnp.zeros_like(gathered))


_LANE_GATHER_SUPPORTED: tp.Optional[bool] = None


def align_prediction_pallas(prediction: jax.Array, inv_idx: jax.Array,
                            n_total: int) -> jax.Array:
    global _LANE_GATHER_SUPPORTED
    out_dtype = (prediction.dtype
                 if jnp.issubdtype(prediction.dtype, jnp.floating)
                 else jnp.float32)
    pred = prediction.reshape(-1).astype(out_dtype)
    n_p = pred.shape[0]
    if n_total == 0:
        return jnp.zeros((0,), out_dtype)
    if n_p == 0:
        return jnp.zeros((n_total,), out_dtype)

    n_pad = inv_idx.shape[-1]                       # round_up(n_total, 128)
    width = max(n_pad, _round_up(n_p, 128))         # degenerate duplicate-heavy case
    if width != n_pad:
        inv_idx = jnp.pad(inv_idx, ((0, 0), (0, width - n_pad)), constant_values=-1)
    pred_row = jnp.zeros((1, width), out_dtype).at[0, :n_p].set(pred)

    if _LANE_GATHER_SUPPORTED is not False:
        try:
            out = pl.pallas_call(
                _align_gather_kernel,
                out_shape=jax.ShapeDtypeStruct((1, width), out_dtype),
                grid=(1,),
                in_specs=[
                    pl.BlockSpec((1, width), lambda i: (0, 0)),   # inverse index (lane-dense)
                    pl.BlockSpec((1, width), lambda i: (0, 0)),   # prediction row (lane-dense)
                ],
                out_specs=pl.BlockSpec((1, width), lambda i: (0, 0)),
            )(inv_idx, pred_row)
            _LANE_GATHER_SUPPORTED = True
            return out[0, :n_total]
        except Exception:
            _LANE_GATHER_SUPPORTED = False
    # TODO(synk): this Mosaic build rejected the in-kernel lane gather; use a
    # plain-XLA gather so the module still runs (same math, outside Pallas).
    inv = inv_idx[0, :n_total]
    gathered = pred_row[0, jnp.clip(inv, 0, width - 1)]
    return jnp.where(inv >= 0, gathered, jnp.zeros_like(gathered))


# ----------------------------------------------------------------------------
# Module wrapper (no learnable parameters defined in the PyTorch __init__)
# ----------------------------------------------------------------------------
class PortfolioActorModelPallas:
    def __init__(self, ticker_list: tp.List[str], input_dim: int, **kwargs) -> None:
        self.ticker_list = list(ticker_list)
        self.input_dim = input_dim
        self._ticker_to_idx = {t: i for i, t in enumerate(self.ticker_list)}
        self._inv_idx_cache: tp.Dict[tp.Tuple[str, ...], jax.Array] = {}

    def actual_forward(self, state):
        # TODO(synk): abstract in the reference module; a concrete subclass should
        # fuse _sanitize() into its first layer's Pallas kernel (and drop the
        # standalone nan_to_num round trip).
        raise NotImplementedError

    def forward(self, state: jax.Array) -> jax.Array:
        # forward() = nan_to_num(state) followed by the (abstract) actual_forward.
        return nan_to_num_pallas(state)

    def _inverse_index_for(self, cross_section_ticker_list: tp.List[str]) -> jax.Array:
        key = tuple(cross_section_ticker_list)
        cached = self._inv_idx_cache.get(key)
        if cached is not None:
            return cached
        n_pad = _round_up(max(len(self.ticker_list), 1), 128)
        inv = [-1] * n_pad
        # Forward iteration + overwrite == last-write-wins for duplicate tickers,
        # matching the reference's in-order assignment semantics.
        for p, ticker in enumerate(cross_section_ticker_list):
            inv[self._ticker_to_idx[ticker]] = p
        arr = jnp.asarray(inv, dtype=jnp.int32).reshape(1, n_pad)
        self._inv_idx_cache[key] = arr
        return arr

    def align_prediction(self, prediction: jax.Array,
                         cross_section_ticker_list: tp.List[str]) -> jax.Array:
        inv_idx = self._inverse_index_for(cross_section_ticker_list)
        return align_prediction_pallas(prediction.reshape(-1), inv_idx,
                                       len(self.ticker_list))


if __name__ == "__main__":
    # Small, deterministic example shapes.
    N_TOTAL = 12          # full ticker universe
    N_P = 8               # cross-section tickers present today
    INPUT_DIM = 32        # feature dimension

    ticker_list = [f"T{i:02d}" for i in range(N_TOTAL)]
    cross_section = [ticker_list[i] for i in (0, 2, 3, 5, 7, 8, 10, 11)]

    key = jax.random.PRNGKey(0)
    state = jax.random.normal(key, (N_P, INPUT_DIM), dtype=jnp.float32)
    # Inject NaN / +-inf to exercise nan_to_num semantics.
    state = state.at[0, 0].set(jnp.nan)
    state = state.at[1, 5].set(jnp.inf)
    state = state.at[2, 7].set(-jnp.inf)

    model = PortfolioActorModelPallas(ticker_list, INPUT_DIM)

    # forward(): tiny inputs take the XLA-fused path; force the Pallas kernel
    # explicitly as well to validate it on-device.
    sanitized = jax.block_until_ready(model.forward(state))
    sanitized_pallas = jax.block_until_ready(nan_to_num_pallas(state, force_pallas=True))
    ref_sanitized = jnp.nan_to_num(state)
    assert jnp.allclose(sanitized, ref_sanitized), "nan_to_num (forward) mismatch"
    assert jnp.allclose(sanitized_pallas, ref_sanitized), "nan_to_num kernel mismatch"

    # Odd-shaped input to exercise the flatten / pad / lane-dense slab path.
    big = jax.random.normal(jax.random.PRNGKey(1), (37, 517), dtype=jnp.float32)
    big = big.at[3, 11].set(jnp.nan).at[10, 100].set(jnp.inf).at[20, 200].set(-jnp.inf)
    big_out = jax.block_until_ready(nan_to_num_pallas(big, force_pallas=True))
    assert jnp.allclose(big_out, jnp.nan_to_num(big)), "nan_to_num slab mismatch"

    # Plain-JAX glue standing in for the abstract actual_forward output:
    prediction = jnp.mean(sanitized, axis=-1)  # (N_P,)

    # align_prediction (scatter into full ticker universe) via the gather kernel.
    aligned = jax.block_until_ready(model.align_prediction(prediction, cross_section))

    # Reference check for align_prediction (no duplicate tickers in the demo).
    idx = jnp.array([ticker_list.index(t) for t in cross_section], dtype=jnp.int32)
    ref_aligned = jnp.zeros((N_TOTAL,), jnp.float32).at[idx].set(prediction)
    assert aligned.shape == (N_TOTAL,)
    assert aligned.dtype == prediction.dtype
    assert jnp.allclose(aligned, ref_aligned), "align_prediction kernel mismatch"

    print("KERNEL_OK")
</pallas_src>

<mosaic_0001>
module attributes {stable_mosaic.version = 11 : i64} {
  func.func @_nan_to_num_kernel(%arg0: i32, %arg1: memref<8x1024xf32, #tpu.memory_space<vmem>>, %arg2: memref<8x1024xf32, #tpu.memory_space<vmem>>) attributes {dimension_semantics = [#tpu.dimension_semantics<parallel>], iteration_bounds = array<i64: 1>, scalar_prefetch = 0 : i64, scratch_operands = 0 : i64, tpu.core_type = #tpu.core_type<tc>, window_params = [{transform_indices = @transform_0, window_bounds = array<i64: 8, 1024>}, {transform_indices = @transform_1, window_bounds = array<i64: 8, 1024>}]} {
    %c0 = arith.constant 0 : index
    %c0_0 = arith.constant 0 : index
    %0 = vector.load %arg1[%c0, %c0_0] : memref<8x1024xf32, #tpu.memory_space<vmem>>, vector<8x1024xf32>
    %1 = arith.cmpf one, %0, %0 : vector<8x1024xf32>
    %cst = arith.constant 0.000000e+00 : f32
    %2 = vector.broadcast %cst : f32 to vector<8x1024xf32>
    %3 = arith.select %1, %2, %0 : vector<8x1024xi1>, vector<8x1024xf32>
    %cst_1 = arith.constant -3.40282347E+38 : f32
    %cst_2 = arith.constant 3.40282347E+38 : f32
    %4 = vector.broadcast %cst_1 : f32 to vector<8x1024xf32>
    %5 = arith.maximumf %4, %3 : vector<8x1024xf32>
    %6 = vector.broadcast %cst_2 : f32 to vector<8x1024xf32>
    %7 = arith.minimumf %6, %5 : vector<8x1024xf32>
    %c0_3 = arith.constant 0 : index
    %c0_4 = arith.constant 0 : index
    %8 = vector.load %arg2[%c0_3, %c0_4] : memref<8x1024xf32, #tpu.memory_space<vmem>>, vector<8x1024xf32>
    tpu.vector_store %arg2[%c0_3, %c0_4], %7 {strides = array<i32>} : memref<8x1024xf32, #tpu.memory_space<vmem>>, vector<8x1024xf32>,
    return
  }
  func.func @transform_0(%arg0: i32) -> (i32, i32) {
    %c0_i32 = arith.constant 0 : i32
    %c0_i32_0 = arith.constant 0 : i32
    return %arg0, %c0_i32 : i32, i32
  }
  func.func @transform_1(%arg0: i32) -> (i32, i32) {
    %c0_i32 = arith.constant 0 : i32
    %c0_i32_0 = arith.constant 0 : i32
    return %arg0, %c0_i32 : i32, i32
  }
}

</mosaic_0001>

<llo_original>
// kernel: tpu_custom_call.1
$region0: #{tpu_custom_call.1}
  #allocation0 [shape = 'u32[]', space=smem, size = 0x4, offset = 0x4, fixed_abs, tag = 'smem constant byte address 0x4 - core index']
  #allocation1 [shape = 'u32[72,128]{1,0:T(1,128)}', space=vmem, size = 0x9000, scoped, tag = 'internal scratch']
  %s0 = inlined_call_operand.hbm [shape: f32[8,1024], index: 0, kind: input, shape index: {}]
  %s1 = inlined_call_operand.hbm [shape: f32[8,1024], index: 1, kind: output, shape index: {}]
  %s2 = sld [smem:[#allocation0]]
  $region18: #{tpu_custom_call.1} parent=0
    _
  %s4 = ssub.s32 1, %s2
  %s5 = scalar_select 0, %s4, %s2
  $region1: #{tpu_custom_call.1} parent=0
    #allocation2 [shape = 'u8[32768]{0}', space=vmem, size = 0x8000, scoped, tag = 'input window, operand 0, single buffered']
    #allocation3 [shape = 's32[1]{0}', space=sflag, size = 0x4, scoped, tag = 'scoped memory for tpu_custom_call.1']
    #allocation4 [shape = 's32[1]{0}', space=sflag, size = 0x4, scoped, tag = 'scoped memory for tpu_custom_call.1']
    #allocation5 [shape = 'u8[32768]{0}', space=vmem, size = 0x8000, scoped, tag = 'output window, operand 0, single buffered']
    %6 = vsyncpa [#allocation3], 0
    %7 = vsyncpa [#allocation4], 0
    // Predicated region
    $region2: #{tpu_custom_call.1} parent=1 // pred_check
      _
    $region3: #{tpu_custom_call.1} parent=1 // pred_check_branch
      %9 = sbr.rel (0) target = $region5
    $region4: #{tpu_custom_call.1} parent=1 // pred_region
      %11 = vsyncadd [#allocation3], 0
      %s13 = sshll.u32 %s0, 4
      %s14 = int_to_ptr.hbm [resolvable:$true] %s13
      %s15 = sshll.u32 [#allocation2], 4
      %s16 = int_to_ptr.vmem [resolvable:$true] %s15
      %18 = dma.hbm_to_vmem [thread:$0]  %s14, 1024, %s16, [#allocation3]
    $region5: #{tpu_custom_call.1} parent=1 // pred_fallthru
      _
    // Predicated region
    $region6: #{tpu_custom_call.1} parent=1 // pred_check
      _
    $region7: #{tpu_custom_call.1} parent=1 // pred_check_branch
      %20 = sbr.rel (0) target = $region9
    $region8: #{tpu_custom_call.1} parent=1 // pred_region
      %22 = dma.done [#allocation3], 1024
    $region9: #{tpu_custom_call.1} parent=1 // pred_fallthru
      _
    %v23 = vld [vmem:[#allocation2] sm:$0xff]
    %v24 = vld [vmem:[#allocation2 + $0x8] sm:$0xff]
    %v25 = vld [vmem:[#allocation2 + $0x10] sm:$0xff]
    %v26 = vld [vmem:[#allocation2 + $0x18] sm:$0xff]
    %v27 = vld [vmem:[#allocation2 + $0x20] sm:$0xff]
    %v28 = vld [vmem:[#allocation2 + $0x28] sm:$0xff]
    %v29 = vld [vmem:[#allocation2 + $0x30] sm:$0xff]
    %v30 = vld [vmem:[#allocation2 + $0x38] sm:$0xff]
    %vm31 = vcmp.ne.f32.partialorder %v23, %v23
    %vm32 = vcmp.ne.f32.partialorder %v24, %v24
    %vm33 = vcmp.ne.f32.partialorder %v25, %v25
    %vm34 = vcmp.ne.f32.partialorder %v26, %v26
    %vm35 = vcmp.ne.f32.partialorder %v27, %v27
    %vm36 = vcmp.ne.f32.partialorder %v28, %v28
    %vm37 = vcmp.ne.f32.partialorder %v29, %v29
    %vm38 = vcmp.ne.f32.partialorder %v30, %v30
    %v39 = vsel %vm31, 0.0, %v23
    %v40 = vsel %vm32, 0.0, %v24
    %v41 = vsel %vm33, 0.0, %v25
    %v42 = vsel %vm34, 0.0, %v26
    %v43 = vsel %vm35, 0.0, %v27
    %v44 = vsel %vm36, 0.0, %v28
    %v45 = vsel %vm37, 0.0, %v29
    %v46 = vsel %vm38, 0.0, %v30
    %v47 = vmax.f32 %v39, -3.4028235e+38
    %v48 = vmax.f32 %v40, -3.4028235e+38
    %v49 = vmax.f32 %v41, -3.4028235e+38
    %v50 = vmax.f32 %v42, -3.4028235e+38
    %v51 = vmax.f32 %v43, -3.4028235e+38
    %v52 = vmax.f32 %v44, -3.4028235e+38
    %v53 = vmax.f32 %v45, -3.4028235e+38
    %v54 = vmax.f32 %v46, -3.4028235e+38
    %v55 = vmin.f32 %v47, 3.4028235e+38
    %v56 = vmin.f32 %v48, 3.4028235e+38
    %v57 = vmin.f32 %v49, 3.4028235e+38
    %v58 = vmin.f32 %v50, 3.4028235e+38
    %v59 = vmin.f32 %v51, 3.4028235e+38
    %v60 = vmin.f32 %v52, 3.4028235e+38
    %v61 = vmin.f32 %v53, 3.4028235e+38
    %v62 = vmin.f32 %v54, 3.4028235e+38
    %63 = vst [vmem:[#allocation5] sm:$0xff] %v55
    %64 = vst [vmem:[#allocation5 + $0x8] sm:$0xff] %v56
    %65 = vst [vmem:[#allocation5 + $0x10] sm:$0xff] %v57
    %66 = vst [vmem:[#allocation5 + $0x18] sm:$0xff] %v58
    %67 = vst [vmem:[#allocation5 + $0x20] sm:$0xff] %v59
    %68 = vst [vmem:[#allocation5 + $0x28] sm:$0xff] %v60
    %69 = vst [vmem:[#allocation5 + $0x30] sm:$0xff] %v61
    %70 = vst [vmem:[#allocation5 + $0x38] sm:$0xff] %v62
    // Predicated region
    $region10: #{tpu_custom_call.1} parent=1 // pred_check
      _
    $region11: #{tpu_custom_call.1} parent=1 // pred_check_branch
      %72 = sbr.rel (0) target = $region13
    $region12: #{tpu_custom_call.1} parent=1 // pred_region
      %74 = vsyncadd [#allocation4], 0
      %s76 = sshll.u32 [#allocation5], 4
      %s77 = int_to_ptr.vmem [resolvable:$true] %s76
      %s78 = sshll.u32 %s1, 4
      %s79 = int_to_ptr.hbm [resolvable:$true] %s78
      %81 = dma.vmem_to_hbm [thread:$0]  %s77, 1024, %s79, [#allocation4]
    $region13: #{tpu_custom_call.1} parent=1 // pred_fallthru
      _
    // Predicated region
    $region14: #{tpu_custom_call.1} parent=1 // pred_check
      _
    $region15: #{tpu_custom_call.1} parent=1 // pred_check_branch
      %83 = sbr.rel (0) target = $region17
    $region16: #{tpu_custom_call.1} parent=1 // pred_region
      %85 = dma.done [#allocation4], 1024
    $region17: #{tpu_custom_call.1} parent=1 // pred_fallthru
      _
    %86 = vsyncpa [#allocation3], 1
    %87 = vsyncpa [#allocation4], 1

</llo_original>
